<compile_context>
chip_gen: v7x
topology: tpu7x:2x2x1
jax: 0.10.0
libtpu: 0.0.40
codegen_flags: <defaults>
</compile_context>

<pallas_src>
import jax
import jax.numpy as jnp
from jax.experimental import pallas as pl
from jax.experimental.pallas import tpu as pltpu


def mlp_kernel(x_ref,
               w1_ref, b1_ref,
               w2_ref, b2_ref,
               w3_ref, b3_ref,
               w4_ref, b4_ref,
               o_ref):
    # x: [in_dim, tb]   (batch in lanes)
    x = x_ref[...]

    h = jnp.dot(w1_ref[...], x, preferred_element_type=jnp.float32) + b1_ref[...]
    h = jnp.maximum(h, 0.0)                                   # [64, tb]

    h = jnp.dot(w2_ref[...], h, preferred_element_type=jnp.float32) + b2_ref[...]
    h = jnp.maximum(h, 0.0)                                   # [32, tb]

    h = jnp.dot(w3_ref[...], h, preferred_element_type=jnp.float32) + b3_ref[...]
    h = jnp.maximum(h, 0.0)                                   # [16, tb]

    out = jnp.dot(w4_ref[...], h, preferred_element_type=jnp.float32) + b4_ref[...]
    o_ref[...] = out.astype(o_ref.dtype)                      # [out_dim, tb]


def mlp_forward(x, params, tile_batch=4096):
    """x: [batch, input_dim] float32.  params: PyTorch-layout weights/biases.

    params[f"w{i}"]: [out_features, in_features]
    params[f"b{i}"]: [out_features, 1]
    Returns [batch, out_dim].
    """
    batch, in_dim = x.shape
    out_dim = params["b4"].shape[0]
    h1 = params["w1"].shape[0]
    h2 = params["w2"].shape[0]
    h3 = params["w3"].shape[0]

    # Batch tile: one full-batch block when it fits, otherwise a lane-dense
    # multiple of 128 (keeps >= 2 grid steps whenever batch > tile_batch, so
    # the "parallel" axis actually splits across v7x's two TensorCores).
    if batch <= tile_batch:
        tb = batch
        padded = batch
    else:
        tb = max(128, (tile_batch // 128) * 128)
        padded = pl.cdiv(batch, tb) * tb

    # Feature-major input: [in_dim, batch] (tiny transpose; pad only the tail
    # columns when the last tile is partial).
    x_t = x.T
    if padded != batch:
        x_t = jnp.pad(x_t, ((0, 0), (0, padded - batch)))

    grid = (padded // tb,)

    args = (x_t,
            params["w1"], params["b1"],
            params["w2"], params["b2"],
            params["w3"], params["b3"],
            params["w4"], params["b4"])

    def const_spec(arr):
        # Whole-array block, same block every grid step -> resident in VMEM.
        return pl.BlockSpec(arr.shape, lambda i: (0, 0))

    in_specs = [pl.BlockSpec((in_dim, tb), lambda i: (0, i))] + \
               [const_spec(a) for a in args[1:]]
    out_specs = pl.BlockSpec((out_dim, tb), lambda i: (0, i))

    flops = 2 * padded * (in_dim * h1 + h1 * h2 + h2 * h3 + h3 * out_dim)
    weight_bytes = sum(int(a.size) * a.dtype.itemsize for a in args[1:])
    bytes_accessed = (int(x_t.size) + padded * out_dim) * 4 + weight_bytes

    out = pl.pallas_call(
        mlp_kernel,
        out_shape=jax.ShapeDtypeStruct((out_dim, padded), jnp.float32),
        grid=grid,
        in_specs=in_specs,
        out_specs=out_specs,
        compiler_params=pltpu.CompilerParams(
            dimension_semantics=("parallel",)),
        cost_estimate=pl.CostEstimate(
            flops=flops, transcendentals=0, bytes_accessed=bytes_accessed),
    )(*args)

    # [out_dim, padded] -> [batch, out_dim]
    return out[:, :batch].T


def init_params(key, input_dim, out_dim):
    """Deterministic init matching the PyTorch module's layer shapes.

    nn.Linear(in, out) -> weight [out, in], bias [out]; weights are kept in
    the PyTorch [out, in] layout (feature-major kernel), biases as [out, 1].
    Uses PyTorch-style uniform(-1/sqrt(fan_in), 1/sqrt(fan_in)) bounds.
    """
    dims = [(input_dim, 64), (64, 32), (32, 16), (16, out_dim)]
    params = {}
    for i, (fan_in, fan_out) in enumerate(dims, start=1):
        key, kw, kb = jax.random.split(key, 3)
        bound = 1.0 / jnp.sqrt(jnp.float32(fan_in))
        params[f"w{i}"] = jax.random.uniform(
            kw, (fan_out, fan_in), jnp.float32, minval=-bound, maxval=bound)
        params[f"b{i}"] = jax.random.uniform(
            kb, (fan_out, 1), jnp.float32, minval=-bound, maxval=bound)
    return params


def reference_forward(x, params):
    """Pure-JAX batch-major reference (matches the PyTorch forward)."""
    h = jnp.maximum(x @ params["w1"].T + params["b1"][:, 0], 0.0)
    h = jnp.maximum(h @ params["w2"].T + params["b2"][:, 0], 0.0)
    h = jnp.maximum(h @ params["w3"].T + params["b3"][:, 0], 0.0)
    return h @ params["w4"].T + params["b4"][:, 0]


if __name__ == "__main__":
    # California housing: 8 input features, 1 regression target.
    input_dim, out_dim = 8, 1

    key = jax.random.PRNGKey(0)
    key, kx = jax.random.split(key)
    params = init_params(key, input_dim, out_dim)

    batch = 512
    x = jax.random.normal(kx, (batch, input_dim), dtype=jnp.float32)
    ref = reference_forward(x, params)

    # Default path: one big lane-dense tile (512 lanes), single grid step.
    out = jax.block_until_ready(mlp_forward(x, params))
    assert out.shape == (batch, out_dim)
    assert jnp.allclose(out, ref, atol=1e-4, rtol=1e-5)

    # Multi-tile path: 4 lane-dense tiles of 128 (exercises the batch grid).
    out_tiled = jax.block_until_ready(mlp_forward(x, params, tile_batch=128))
    assert jnp.allclose(out_tiled, ref, atol=1e-4, rtol=1e-5)

    # Remainder path: partial last tile is zero-padded and sliced off.
    out_odd = jax.block_until_ready(mlp_forward(x[:300], params, tile_batch=128))
    assert jnp.allclose(out_odd, ref[:300], atol=1e-4, rtol=1e-5)

    # Tiny single-block path (block == full array dims, lane dim < 128 is ok).
    out_small = jax.block_until_ready(mlp_forward(x[:8], params))
    assert jnp.allclose(out_small, ref[:8], atol=1e-4, rtol=1e-5)

    print("KERNEL_OK")
</pallas_src>

<mosaic_0001>
module attributes {stable_mosaic.version = 11 : i64} {
  func.func @mlp_kernel(%arg0: i32, %arg1: memref<8x512xf32, #tpu.memory_space<vmem>>, %arg2: memref<64x8xf32, #tpu.memory_space<vmem>>, %arg3: memref<64x1xf32, #tpu.memory_space<vmem>>, %arg4: memref<32x64xf32, #tpu.memory_space<vmem>>, %arg5: memref<32x1xf32, #tpu.memory_space<vmem>>, %arg6: memref<16x32xf32, #tpu.memory_space<vmem>>, %arg7: memref<16x1xf32, #tpu.memory_space<vmem>>, %arg8: memref<1x16xf32, #tpu.memory_space<vmem>>, %arg9: memref<1x1xf32, #tpu.memory_space<vmem>>, %arg10: memref<1x512xf32, #tpu.memory_space<vmem>>) attributes {dimension_semantics = [#tpu.dimension_semantics<parallel>], iteration_bounds = array<i64: 1>, scalar_prefetch = 0 : i64, scratch_operands = 0 : i64, tpu.core_type = #tpu.core_type<tc>, window_params = [{transform_indices = @transform_0, window_bounds = array<i64: 8, 512>}, {pipeline_mode = #tpu.pipeline_mode<synchronous>, transform_indices = @transform_1, window_bounds = array<i64: 64, 8>}, {pipeline_mode = #tpu.pipeline_mode<synchronous>, transform_indices = @transform_2, window_bounds = array<i64: 64, 1>}, {pipeline_mode = #tpu.pipeline_mode<synchronous>, transform_indices = @transform_3, window_bounds = array<i64: 32, 64>}, {pipeline_mode = #tpu.pipeline_mode<synchronous>, transform_indices = @transform_4, window_bounds = array<i64: 32, 1>}, {pipeline_mode = #tpu.pipeline_mode<synchronous>, transform_indices = @transform_5, window_bounds = array<i64: 16, 32>}, {pipeline_mode = #tpu.pipeline_mode<synchronous>, transform_indices = @transform_6, window_bounds = array<i64: 16, 1>}, {pipeline_mode = #tpu.pipeline_mode<synchronous>, transform_indices = @transform_7, window_bounds = array<i64: 1, 16>}, {pipeline_mode = #tpu.pipeline_mode<synchronous>, transform_indices = @transform_8, window_bounds = array<i64: 1, 1>}, {transform_indices = @transform_9, window_bounds = array<i64: 1, 512>}]} {
    %c0 = arith.constant 0 : index
    %c0_0 = arith.constant 0 : index
    %0 = vector.load %arg1[%c0, %c0_0] : memref<8x512xf32, #tpu.memory_space<vmem>>, vector<8x512xf32>
    %c0_1 = arith.constant 0 : index
    %c0_2 = arith.constant 0 : index
    %1 = vector.load %arg2[%c0_1, %c0_2] : memref<64x8xf32, #tpu.memory_space<vmem>>, vector<64x8xf32>
    %cst = arith.constant dense<0.000000e+00> : vector<64x512xf32>
    %2 = tpu.matmul %1, %0, %cst {dimension_numbers = #tpu.dot_dimension_numbers<[1], [0], [0], [1], [0, 0, 1, 1], [], []>} : vector<64x8xf32>, vector<8x512xf32>, vector<64x512xf32> -> vector<64x512xf32>
    %c0_3 = arith.constant 0 : index
    %c0_4 = arith.constant 0 : index
    %3 = vector.load %arg3[%c0_3, %c0_4] : memref<64x1xf32, #tpu.memory_space<vmem>>, vector<64x1xf32>
    %4 = vector.broadcast %3 : vector<64x1xf32> to vector<64x512xf32>
    %5 = arith.addf %2, %4 : vector<64x512xf32>
    %cst_5 = arith.constant 0.000000e+00 : f32
    %6 = vector.broadcast %cst_5 : f32 to vector<64x512xf32>
    %7 = arith.maximumf %5, %6 : vector<64x512xf32>
    %c0_6 = arith.constant 0 : index
    %c0_7 = arith.constant 0 : index
    %8 = vector.load %arg4[%c0_6, %c0_7] : memref<32x64xf32, #tpu.memory_space<vmem>>, vector<32x64xf32>
    %cst_8 = arith.constant dense<0.000000e+00> : vector<32x512xf32>
    %9 = tpu.matmul %8, %7, %cst_8 {dimension_numbers = #tpu.dot_dimension_numbers<[1], [0], [0], [1], [0, 0, 1, 1], [], []>} : vector<32x64xf32>, vector<64x512xf32>, vector<32x512xf32> -> vector<32x512xf32>
    %c0_9 = arith.constant 0 : index
    %c0_10 = arith.constant 0 : index
    %10 = vector.load %arg5[%c0_9, %c0_10] : memref<32x1xf32, #tpu.memory_space<vmem>>, vector<32x1xf32>
    %11 = vector.broadcast %10 : vector<32x1xf32> to vector<32x512xf32>
    %12 = arith.addf %9, %11 : vector<32x512xf32>
    %cst_11 = arith.constant 0.000000e+00 : f32
    %13 = vector.broadcast %cst_11 : f32 to vector<32x512xf32>
    %14 = arith.maximumf %12, %13 : vector<32x512xf32>
    %c0_12 = arith.constant 0 : index
    %c0_13 = arith.constant 0 : index
    %15 = vector.load %arg6[%c0_12, %c0_13] : memref<16x32xf32, #tpu.memory_space<vmem>>, vector<16x32xf32>
    %cst_14 = arith.constant dense<0.000000e+00> : vector<16x512xf32>
    %16 = tpu.matmul %15, %14, %cst_14 {dimension_numbers = #tpu.dot_dimension_numbers<[1], [0], [0], [1], [0, 0, 1, 1], [], []>} : vector<16x32xf32>, vector<32x512xf32>, vector<16x512xf32> -> vector<16x512xf32>
    %c0_15 = arith.constant 0 : index
    %c0_16 = arith.constant 0 : index
    %17 = vector.load %arg7[%c0_15, %c0_16] : memref<16x1xf32, #tpu.memory_space<vmem>>, vector<16x1xf32>
    %18 = vector.broadcast %17 : vector<16x1xf32> to vector<16x512xf32>
    %19 = arith.addf %16, %18 : vector<16x512xf32>
    %cst_17 = arith.constant 0.000000e+00 : f32
    %20 = vector.broadcast %cst_17 : f32 to vector<16x512xf32>
    %21 = arith.maximumf %19, %20 : vector<16x512xf32>
    %c0_18 = arith.constant 0 : index
    %c0_19 = arith.constant 0 : index
    %22 = vector.load %arg8[%c0_18, %c0_19] : memref<1x16xf32, #tpu.memory_space<vmem>>, vector<1x16xf32>
    %cst_20 = arith.constant dense<0.000000e+00> : vector<1x512xf32>
    %23 = tpu.matmul %22, %21, %cst_20 {dimension_numbers = #tpu.dot_dimension_numbers<[1], [0], [0], [1], [0, 0, 1, 1], [], []>} : vector<1x16xf32>, vector<16x512xf32>, vector<1x512xf32> -> vector<1x512xf32>
    %c0_21 = arith.constant 0 : index
    %c0_22 = arith.constant 0 : index
    %24 = vector.load %arg9[%c0_21, %c0_22] : memref<1x1xf32, #tpu.memory_space<vmem>>, vector<1x1xf32>
    %25 = vector.broadcast %24 : vector<1x1xf32> to vector<1x512xf32>
    %26 = arith.addf %23, %25 : vector<1x512xf32>
    %c0_23 = arith.constant 0 : index
    %c0_24 = arith.constant 0 : index
    %27 = vector.load %arg10[%c0_23, %c0_24] : memref<1x512xf32, #tpu.memory_space<vmem>>, vector<1x512xf32>
    tpu.vector_store %arg10[%c0_23, %c0_24], %26 {strides = array<i32>} : memref<1x512xf32, #tpu.memory_space<vmem>>, vector<1x512xf32>,
    return
  }
  func.func @transform_0(%arg0: i32) -> (i32, i32) {
    %c0_i32 = arith.constant 0 : i32
    %c0_i32_0 = arith.constant 0 : i32
    return %c0_i32, %arg0 : i32, i32
  }
  func.func @transform_1(%arg0: i32) -> (i32, i32) {
    %c0_i32 = arith.constant 0 : i32
    %c0_i32_0 = arith.constant 0 : i32
    %c0_i32_1 = arith.constant 0 : i32
    return %c0_i32, %c0_i32_0 : i32, i32
  }
  func.func @transform_2(%arg0: i32) -> (i32, i32) {
    %c0_i32 = arith.constant 0 : i32
    %c0_i32_0 = arith.constant 0 : i32
    %c0_i32_1 = arith.constant 0 : i32
    return %c0_i32, %c0_i32_0 : i32, i32
  }
  func.func @transform_3(%arg0: i32) -> (i32, i32) {
    %c0_i32 = arith.constant 0 : i32
    %c0_i32_0 = arith.constant 0 : i32
    %c0_i32_1 = arith.constant 0 : i32
    return %c0_i32, %c0_i32_0 : i32, i32
  }
  func.func @transform_4(%arg0: i32) -> (i32, i32) {
    %c0_i32 = arith.constant 0 : i32
    %c0_i32_0 = arith.constant 0 : i32
    %c0_i32_1 = arith.constant 0 : i32
    return %c0_i32, %c0_i32_0 : i32, i32
  }
  func.func @transform_5(%arg0: i32) -> (i32, i32) {
    %c0_i32 = arith.constant 0 : i32
    %c0_i32_0 = arith.constant 0 : i32
    %c0_i32_1 = arith.constant 0 : i32
    return %c0_i32, %c0_i32_0 : i32, i32
  }
  func.func @transform_6(%arg0: i32) -> (i32, i32) {
    %c0_i32 = arith.constant 0 : i32
    %c0_i32_0 = arith.constant 0 : i32
    %c0_i32_1 = arith.constant 0 : i32
    return %c0_i32, %c0_i32_0 : i32, i32
  }
  func.func @transform_7(%arg0: i32) -> (i32, i32) {
    %c0_i32 = arith.constant 0 : i32
    %c0_i32_0 = arith.constant 0 : i32
    %c0_i32_1 = arith.constant 0 : i32
    return %c0_i32, %c0_i32_0 : i32, i32
  }
  func.func @transform_8(%arg0: i32) -> (i32, i32) {
    %c0_i32 = arith.constant 0 : i32
    %c0_i32_0 = arith.constant 0 : i32
    %c0_i32_1 = arith.constant 0 : i32
    return %c0_i32, %c0_i32_0 : i32, i32
  }
  func.func @transform_9(%arg0: i32) -> (i32, i32) {
    %c0_i32 = arith.constant 0 : i32
    %c0_i32_0 = arith.constant 0 : i32
    return %c0_i32, %arg0 : i32, i32
  }
}

</mosaic_0001>

<llo_original>
// kernel: tpu_custom_call.1
$region0: #{tpu_custom_call.1}
  #allocation0 [shape = 'u32[]', space=smem, size = 0x4, offset = 0x4, fixed_abs, tag = 'smem constant byte address 0x4 - core index']
  #allocation1 [shape = 'u32[144,128]{1,0:T(1,128)}', space=vmem, size = 0x12000, scoped, tag = 'internal scratch']
  #allocation2 [shape = 'f32[1,1]{1,0:T(1,128)S(1)}', space=vmem, size = 0x200, scoped, tag = 'scoped memory for tpu_custom_call.1']
  %s0 = inlined_call_operand.vmem [shape: f32[8,512], index: 0, kind: input, shape index: {}]
  %s1 = inlined_call_operand.vmem [shape: f32[64,8], index: 1, kind: input, shape index: {}]
  %s2 = inlined_call_operand.vmem [shape: f32[64,1], index: 2, kind: input, shape index: {}]
  %s3 = inlined_call_operand.vmem [shape: f32[32,64], index: 3, kind: input, shape index: {}]
  %s4 = inlined_call_operand.vmem [shape: f32[32,1], index: 4, kind: input, shape index: {}]
  %s5 = inlined_call_operand.vmem [shape: f32[16,32], index: 5, kind: input, shape index: {}]
  %s6 = inlined_call_operand.vmem [shape: f32[16,1], index: 6, kind: input, shape index: {}]
  %s7 = inlined_call_operand.vmem [shape: f32[1,16], index: 7, kind: input, shape index: {}]
  %s8 = inlined_call_operand.<no memory space> [shape: f32[1,1], index: 8, kind: input, shape index: {}]
  %s9 = inlined_call_operand.hbm [shape: f32[1,512], index: 9, kind: output, shape index: {}]
  %s10 = sld [smem:[#allocation0]]
  $region46: #{tpu_custom_call.1} parent=0
    _
  %s12 = ssub.s32 1, %s10
  %s13 = scalar_select 0, %s12, %s10
  %v14 = vstv %s8
  %15 = vst [vmem:[#allocation2] sm:$0x1] %v14
  $region1: #{tpu_custom_call.1} parent=0
    #allocation3 [shape = 'u8[2048]{0}', space=vmem, size = 0x800, scoped, tag = 'output window, operand 0, single buffered']
    #allocation4 [shape = 's32[1]{0}', space=sflag, size = 0x4, scoped, tag = 'scoped memory for tpu_custom_call.1']
    %16 = vsyncpa [#allocation4], 0
    // Predicated region
    $region2: #{tpu_custom_call.1} parent=1 // pred_check
      _
    $region3: #{tpu_custom_call.1} parent=1 // pred_check_branch
      %18 = sbr.rel (0) target = $region5
    $region4: #{tpu_custom_call.1} parent=1 // pred_region
      _
    $region5: #{tpu_custom_call.1} parent=1 // pred_fallthru
      _
    // Predicated region
    $region6: #{tpu_custom_call.1} parent=1 // pred_check
      _
    $region7: #{tpu_custom_call.1} parent=1 // pred_check_branch
      %20 = sbr.rel (0) target = $region9
    $region8: #{tpu_custom_call.1} parent=1 // pred_region
      _
    $region9: #{tpu_custom_call.1} parent=1 // pred_fallthru
      _
    // Predicated region
    $region10: #{tpu_custom_call.1} parent=1 // pred_check
      _
    $region11: #{tpu_custom_call.1} parent=1 // pred_check_branch
      %22 = sbr.rel (0) target = $region13
    $region12: #{tpu_custom_call.1} parent=1 // pred_region
      _
    $region13: #{tpu_custom_call.1} parent=1 // pred_fallthru
      _
    // Predicated region
    $region14: #{tpu_custom_call.1} parent=1 // pred_check
      _
    $region15: #{tpu_custom_call.1} parent=1 // pred_check_branch
      %24 = sbr.rel (0) target = $region17
    $region16: #{tpu_custom_call.1} parent=1 // pred_region
      _
    $region17: #{tpu_custom_call.1} parent=1 // pred_fallthru
      _
    // Predicated region
    $region18: #{tpu_custom_call.1} parent=1 // pred_check
      _
    $region19: #{tpu_custom_call.1} parent=1 // pred_check_branch
      %26 = sbr.rel (0) target = $region21
    $region20: #{tpu_custom_call.1} parent=1 // pred_region
      _
    $region21: #{tpu_custom_call.1} parent=1 // pred_fallthru
      _
    // Predicated region
    $region22: #{tpu_custom_call.1} parent=1 // pred_check
      _
    $region23: #{tpu_custom_call.1} parent=1 // pred_check_branch
      %28 = sbr.rel (0) target = $region25
    $region24: #{tpu_custom_call.1} parent=1 // pred_region
      _
    $region25: #{tpu_custom_call.1} parent=1 // pred_fallthru
      _
    // Predicated region
    $region26: #{tpu_custom_call.1} parent=1 // pred_check
      _
    $region27: #{tpu_custom_call.1} parent=1 // pred_check_branch
      %30 = sbr.rel (0) target = $region29
    $region28: #{tpu_custom_call.1} parent=1 // pred_region
      _
    $region29: #{tpu_custom_call.1} parent=1 // pred_fallthru
      _
    // Predicated region
    $region30: #{tpu_custom_call.1} parent=1 // pred_check
      _
    $region31: #{tpu_custom_call.1} parent=1 // pred_check_branch
      %32 = sbr.rel (0) target = $region33
    $region32: #{tpu_custom_call.1} parent=1 // pred_region
      _
    $region33: #{tpu_custom_call.1} parent=1 // pred_fallthru
      _
    // Predicated region
    $region34: #{tpu_custom_call.1} parent=1 // pred_check
      _
    $region35: #{tpu_custom_call.1} parent=1 // pred_check_branch
      %34 = sbr.rel (0) target = $region37
    $region36: #{tpu_custom_call.1} parent=1 // pred_region
      _
    $region37: #{tpu_custom_call.1} parent=1 // pred_fallthru
      _
    %v35 = vld [vmem:[%s0] sm:$0xff]
    %v36 = vld [vmem:[%s0 + $0x8] sm:$0xff]
    %v37 = vld [vmem:[%s0 + $0x10] sm:$0xff]
    %v38 = vld [vmem:[%s0 + $0x18] sm:$0xff]
    %v39 = vld [vmem:[%s1] sm:$0xff]
    %v40 = vld [vmem:[%s1 + $0x8] sm:$0xff]
    %v41 = vld [vmem:[%s1 + $0x10] sm:$0xff]
    %v42 = vld [vmem:[%s1 + $0x18] sm:$0xff]
    %v43 = vld [vmem:[%s1 + $0x20] sm:$0xff]
    %v44 = vld [vmem:[%s1 + $0x28] sm:$0xff]
    %v45 = vld [vmem:[%s1 + $0x30] sm:$0xff]
    %v46 = vld [vmem:[%s1 + $0x38] sm:$0xff]
    %v47 = vld [vmem:[%s2] sm:$0xff]
    %v48 = vld [vmem:[%s2 + $0x8] sm:$0xff]
    %v49 = vld [vmem:[%s2 + $0x10] sm:$0xff]
    %v50 = vld [vmem:[%s2 + $0x18] sm:$0xff]
    %v51 = vld [vmem:[%s2 + $0x20] sm:$0xff]
    %v52 = vld [vmem:[%s2 + $0x28] sm:$0xff]
    %v53 = vld [vmem:[%s2 + $0x30] sm:$0xff]
    %v54 = vld [vmem:[%s2 + $0x38] sm:$0xff]
    %56 = vset.pattern.permute.xlu0 0
    %57 = vperm.xlu0 %56, %v47
    %v58 = vpop.permute.xlu0 %57
    %61 = vset.pattern.permute.xlu0 0
    %62 = vperm.xlu0 %61, %v48
    %v63 = vpop.permute.xlu0 %62
    %66 = vset.pattern.permute.xlu0 0
    %67 = vperm.xlu0 %66, %v49
    %v68 = vpop.permute.xlu0 %67
    %71 = vset.pattern.permute.xlu0 0
    %72 = vperm.xlu0 %71, %v50
    %v73 = vpop.permute.xlu0 %72
    %76 = vset.pattern.permute.xlu0 0
    %77 = vperm.xlu0 %76, %v51
    %v78 = vpop.permute.xlu0 %77
    %81 = vset.pattern.permute.xlu0 0
    %82 = vperm.xlu0 %81, %v52
    %v83 = vpop.permute.xlu0 %82
    %86 = vset.pattern.permute.xlu0 0
    %87 = vperm.xlu0 %86, %v53
    %v88 = vpop.permute.xlu0 %87
    %91 = vset.pattern.permute.xlu0 0
    %92 = vperm.xlu0 %91, %v54
    %v93 = vpop.permute.xlu0 %92
    %vm95 = vcmask 64512
    %v97 = vsel %vm95, %v39, 0
    %v100 = vsel %vm95, %v40, 0
    %v103 = vsel %vm95, %v41, 0
    %v106 = vsel %vm95, %v42, 0
    %v109 = vsel %vm95, %v43, 0
    %v112 = vsel %vm95, %v44, 0
    %v115 = vsel %vm95, %v45, 0
    %v118 = vsel %vm95, %v46, 0
    %120 = vmatprep.subr.mxu0 %v36
    %121 = vmatpush1.msra.mxu0 %v35
    %122 = vmatprep.subr.mxu0 0.0
    %123 = vmatpush1.msra.mxu0 0.0
    %124 = vmatprep.subr.mxu0 0.0
    %125 = vmatpush1.msra.mxu0 0.0
    %126 = vmatprep.subr.mxu0 0.0
    %127 = vmatpush1.msra.mxu0 0.0
    %128 = vmatprep.subr.mxu0 0.0
    %129 = vmatpush1.msra.mxu0 0.0
    %130 = vmatprep.subr.mxu0 0.0
    %131 = vmatpush1.msra.mxu0 0.0
    %132 = vmatprep.subr.mxu0 0.0
    %133 = vmatpush1.msra.mxu0 0.0
    %134 = vmatprep.subr.mxu0 0.0
    %135 = vmatpush1.msra.mxu0 0.0
    %136 = vmatprep.subr.mxu0 0.0
    %137 = vmatpush1.msra.mxu0 0.0
    %138 = vmatprep.subr.mxu0 0.0
    %139 = vmatpush1.msra.mxu0 0.0
    %140 = vmatprep.subr.mxu0 0.0
    %141 = vmatpush1.msra.mxu0 0.0
    %142 = vmatprep.subr.mxu0 0.0
    %143 = vmatpush1.msra.mxu0 0.0
    %144 = vmatprep.subr.mxu0 0.0
    %145 = vmatpush1.msra.mxu0 0.0
    %146 = vmatprep.subr.mxu0 0.0
    %147 = vmatpush1.msra.mxu0 0.0
    %148 = vmatprep.subr.mxu0 0.0
    %149 = vmatpush1.msra.mxu0 0.0
    %150 = vmatprep.subr.mxu0 0.0
    %151 = vmatpush1.msra.mxu0 0.0
    %152 = vmatprep.subr.mxu0 0.0
    %153 = vmatpush1.msra.mxu0 0.0
    %154 = vmatprep.subr.mxu0 0.0
    %155 = vmatpush1.msra.mxu0 0.0
    %156 = vmatprep.subr.mxu0 0.0
    %157 = vmatpush1.msra.mxu0 0.0
    %158 = vmatprep.subr.mxu0 0.0
    %159 = vmatpush1.msra.mxu0 0.0
    %160 = vmatprep.subr.mxu0 0.0
    %161 = vmatpush1.msra.mxu0 0.0
    %162 = vmatprep.subr.mxu0 0.0
    %163 = vmatpush1.msra.mxu0 0.0
    %164 = vmatprep.subr.mxu0 0.0
    %165 = vmatpush1.msra.mxu0 0.0
    %166 = vmatprep.subr.mxu0 0.0
    %167 = vmatpush1.msra.mxu0 0.0
    %168 = vmatprep.subr.mxu0 0.0
    %169 = vmatpush1.msra.mxu0 0.0
    %170 = vmatprep.subr.mxu0 0.0
    %171 = vmatpush1.msra.mxu0 0.0
    %172 = vmatprep.subr.mxu0 0.0
    %173 = vmatpush1.msra.mxu0 0.0
    %174 = vmatprep.subr.mxu0 0.0
    %175 = vmatpush1.msra.mxu0 0.0
    %176 = vmatprep.subr.mxu0 0.0
    %177 = vmatpush1.msra.mxu0 0.0
    %178 = vmatprep.subr.mxu0 0.0
    %179 = vmatpush1.msra.mxu0 0.0
    %180 = vmatprep.subr.mxu0 0.0
    %181 = vmatpush1.msra.mxu0 0.0
    %182 = vmatprep.subr.mxu0 0.0
    %183 = vmatpush1.msra.mxu0 0.0
    %184 = vmatprep.mubr.f32.mxu0 0.0
    %185 = vmatmul.mubr.f32.gmra.mrb[0].mxu0 %v97
    %v186 = vpop.f32.mrb[0].mxu0
    %v187 = vadd.f32 %v58, %v186
    %v188 = vpop.f32.mrb[0].mxu0
    %v189 = vadd.f32 %v58, %v188
    %190 = vmatprep.mubr.f32.mxu0 0.0
    %191 = vmatmul.mubr.f32.gmra.mrb[0].mxu0 %v100
    %v192 = vpop.f32.mrb[0].mxu0
    %v193 = vadd.f32 %v63, %v192
    %v194 = vpop.f32.mrb[0].mxu0
    %v195 = vadd.f32 %v63, %v194
    %196 = vmatprep.mubr.f32.mxu0 0.0
    %197 = vmatmul.mubr.f32.gmra.mrb[0].mxu0 %v103
    %v198 = vpop.f32.mrb[0].mxu0
    %v199 = vadd.f32 %v68, %v198
    %v200 = vpop.f32.mrb[0].mxu0
    %v201 = vadd.f32 %v68, %v200
    %202 = vmatprep.mubr.f32.mxu0 0.0
    %203 = vmatmul.mubr.f32.gmra.mrb[0].mxu0 %v106
    %v204 = vpop.f32.mrb[0].mxu0
    %v205 = vadd.f32 %v73, %v204
    %v206 = vpop.f32.mrb[0].mxu0
    %v207 = vadd.f32 %v73, %v206
    %208 = vmatprep.mubr.f32.mxu0 0.0
    %209 = vmatmul.mubr.f32.gmra.mrb[0].mxu0 %v109
    %v210 = vpop.f32.mrb[0].mxu0
    %v211 = vadd.f32 %v78, %v210
    %v212 = vpop.f32.mrb[0].mxu0
    %v213 = vadd.f32 %v78, %v212
    %214 = vmatprep.mubr.f32.mxu0 0.0
    %215 = vmatmul.mubr.f32.gmra.mrb[0].mxu0 %v112
    %v216 = vpop.f32.mrb[0].mxu0
    %v217 = vadd.f32 %v83, %v216
    %v218 = vpop.f32.mrb[0].mxu0
    %v219 = vadd.f32 %v83, %v218
    %220 = vmatprep.mubr.f32.mxu0 0.0
    %221 = vmatmul.mubr.f32.gmra.mrb[0].mxu0 %v115
    %v222 = vpop.f32.mrb[0].mxu0
    %v223 = vadd.f32 %v88, %v222
    %v224 = vpop.f32.mrb[0].mxu0
    %v225 = vadd.f32 %v88, %v224
    %226 = vmatprep.mubr.f32.mxu0 0.0
    %227 = vmatmul.mubr.f32.gmra.mrb[0].mxu0 %v118
    %v228 = vpop.f32.mrb[0].mxu0
    %v229 = vadd.f32 %v93, %v228
    %v230 = vpop.f32.mrb[0].mxu0
    %v231 = vadd.f32 %v93, %v230
    %232 = vdwg.mxu0
    %233 = vmatprep.subr.mxu0 %v38
    %234 = vmatpush1.msra.mxu0 %v37
    %235 = vmatprep.subr.mxu0 0.0
    %236 = vmatpush1.msra.mxu0 0.0
    %237 = vmatprep.subr.mxu0 0.0
    %238 = vmatpush1.msra.mxu0 0.0
    %239 = vmatprep.subr.mxu0 0.0
    %240 = vmatpush1.msra.mxu0 0.0
    %241 = vmatprep.subr.mxu0 0.0
    %242 = vmatpush1.msra.mxu0 0.0
    %243 = vmatprep.subr.mxu0 0.0
    %244 = vmatpush1.msra.mxu0 0.0
    %245 = vmatprep.subr.mxu0 0.0
    %246 = vmatpush1.msra.mxu0 0.0
    %247 = vmatprep.subr.mxu0 0.0
    %248 = vmatpush1.msra.mxu0 0.0
    %249 = vmatprep.subr.mxu0 0.0
    %250 = vmatpush1.msra.mxu0 0.0
    %251 = vmatprep.subr.mxu0 0.0
    %252 = vmatpush1.msra.mxu0 0.0
    %253 = vmatprep.subr.mxu0 0.0
    %254 = vmatpush1.msra.mxu0 0.0
    %255 = vmatprep.subr.mxu0 0.0
    %256 = vmatpush1.msra.mxu0 0.0
    %257 = vmatprep.subr.mxu0 0.0
    %258 = vmatpush1.msra.mxu0 0.0
    %259 = vmatprep.subr.mxu0 0.0
    %260 = vmatpush1.msra.mxu0 0.0
    %261 = vmatprep.subr.mxu0 0.0
    %262 = vmatpush1.msra.mxu0 0.0
    %263 = vmatprep.subr.mxu0 0.0
    %264 = vmatpush1.msra.mxu0 0.0
    %265 = vmatprep.subr.mxu0 0.0
    %266 = vmatpush1.msra.mxu0 0.0
    %267 = vmatprep.subr.mxu0 0.0
    %268 = vmatpush1.msra.mxu0 0.0
    %269 = vmatprep.subr.mxu0 0.0
    %270 = vmatpush1.msra.mxu0 0.0
    %271 = vmatprep.subr.mxu0 0.0
    %272 = vmatpush1.msra.mxu0 0.0
    %273 = vmatprep.subr.mxu0 0.0
    %274 = vmatpush1.msra.mxu0 0.0
    %275 = vmatprep.subr.mxu0 0.0
    %276 = vmatpush1.msra.mxu0 0.0
    %277 = vmatprep.subr.mxu0 0.0
    %278 = vmatpush1.msra.mxu0 0.0
    %279 = vmatprep.subr.mxu0 0.0
    %280 = vmatpush1.msra.mxu0 0.0
    %281 = vmatprep.subr.mxu0 0.0
    %282 = vmatpush1.msra.mxu0 0.0
    %283 = vmatprep.subr.mxu0 0.0
    %284 = vmatpush1.msra.mxu0 0.0
    %285 = vmatprep.subr.mxu0 0.0
    %286 = vmatpush1.msra.mxu0 0.0
    %287 = vmatprep.subr.mxu0 0.0
    %288 = vmatpush1.msra.mxu0 0.0
    %289 = vmatprep.subr.mxu0 0.0
    %290 = vmatpush1.msra.mxu0 0.0
    %291 = vmatprep.subr.mxu0 0.0
    %292 = vmatpush1.msra.mxu0 0.0
    %293 = vmatprep.subr.mxu0 0.0
    %294 = vmatpush1.msra.mxu0 0.0
    %295 = vmatprep.subr.mxu0 0.0
    %296 = vmatpush1.msra.mxu0 0.0
    %297 = vmatprep.mubr.f32.mxu0 0.0
    %298 = vmatmul.mubr.f32.gmra.mrb[0].mxu0 %v97
    %v299 = vpop.f32.mrb[0].mxu0
    %v300 = vadd.f32 %v58, %v299
    %v301 = vpop.f32.mrb[0].mxu0
    %v302 = vadd.f32 %v58, %v301
    %303 = vmatprep.mubr.f32.mxu0 0.0
    %304 = vmatmul.mubr.f32.gmra.mrb[0].mxu0 %v100
    %v305 = vpop.f32.mrb[0].mxu0
    %v306 = vadd.f32 %v63, %v305
    %v307 = vpop.f32.mrb[0].mxu0
    %v308 = vadd.f32 %v63, %v307
    %309 = vmatprep.mubr.f32.mxu0 0.0
    %310 = vmatmul.mubr.f32.gmra.mrb[0].mxu0 %v103
    %v311 = vpop.f32.mrb[0].mxu0
    %v312 = vadd.f32 %v68, %v311
    %v313 = vpop.f32.mrb[0].mxu0
    %v314 = vadd.f32 %v68, %v313
    %315 = vmatprep.mubr.f32.mxu0 0.0
    %316 = vmatmul.mubr.f32.gmra.mrb[0].mxu0 %v106
    %v317 = vpop.f32.mrb[0].mxu0
    %v318 = vadd.f32 %v73, %v317
    %v319 = vpop.f32.mrb[0].mxu0
    %v320 = vadd.f32 %v73, %v319
    %321 = vmatprep.mubr.f32.mxu0 0.0
    %322 = vmatmul.mubr.f32.gmra.mrb[0].mxu0 %v109
    %v323 = vpop.f32.mrb[0].mxu0
    %v324 = vadd.f32 %v78, %v323
    %v325 = vpop.f32.mrb[0].mxu0
    %v326 = vadd.f32 %v78, %v325
    %327 = vmatprep.mubr.f32.mxu0 0.0
    %328 = vmatmul.mubr.f32.gmra.mrb[0].mxu0 %v112
    %v329 = vpop.f32.mrb[0].mxu0
    %v330 = vadd.f32 %v83, %v329
    %v331 = vpop.f32.mrb[0].mxu0
    %v332 = vadd.f32 %v83, %v331
    %333 = vmatprep.mubr.f32.mxu0 0.0
    %334 = vmatmul.mubr.f32.gmra.mrb[0].mxu0 %v115
    %v335 = vpop.f32.mrb[0].mxu0
    %v336 = vadd.f32 %v88, %v335
    %v337 = vpop.f32.mrb[0].mxu0
    %v338 = vadd.f32 %v88, %v337
    %339 = vmatprep.mubr.f32.mxu0 0.0
    %340 = vmatmul.mubr.f32.gmra.mrb[0].mxu0 %v118
    %v341 = vpop.f32.mrb[0].mxu0
    %v342 = vadd.f32 %v93, %v341
    %v343 = vpop.f32.mrb[0].mxu0
    %v344 = vadd.f32 %v93, %v343
    %345 = vdwg.mxu0
    %v346 = vmax.f32 %v187, 0.0
    %v347 = vmax.f32 %v189, 0.0
    %v348 = vmax.f32 %v300, 0.0
    %v349 = vmax.f32 %v302, 0.0
    %v350 = vmax.f32 %v193, 0.0
    %v351 = vmax.f32 %v195, 0.0
    %v352 = vmax.f32 %v306, 0.0
    %v353 = vmax.f32 %v308, 0.0
    %v354 = vmax.f32 %v199, 0.0
    %v355 = vmax.f32 %v201, 0.0
    %v356 = vmax.f32 %v312, 0.0
    %v357 = vmax.f32 %v314, 0.0
    %v358 = vmax.f32 %v205, 0.0
    %v359 = vmax.f32 %v207, 0.0
    %v360 = vmax.f32 %v318, 0.0
    %v361 = vmax.f32 %v320, 0.0
    %v362 = vmax.f32 %v211, 0.0
    %v363 = vmax.f32 %v213, 0.0
    %v364 = vmax.f32 %v324, 0.0
    %v365 = vmax.f32 %v326, 0.0
    %v366 = vmax.f32 %v217, 0.0
    %v367 = vmax.f32 %v219, 0.0
    %v368 = vmax.f32 %v330, 0.0
    %v369 = vmax.f32 %v332, 0.0
    %v370 = vmax.f32 %v223, 0.0
    %v371 = vmax.f32 %v225, 0.0
    %v372 = vmax.f32 %v336, 0.0
    %v373 = vmax.f32 %v338, 0.0
    %v374 = vmax.f32 %v229, 0.0
    %v375 = vmax.f32 %v231, 0.0
    %v376 = vmax.f32 %v342, 0.0
    %v377 = vmax.f32 %v344, 0.0
    %v378 = vld [vmem:[%s3] sm:$0xff]
    %v379 = vld [vmem:[%s3 + $0x8] sm:$0xff]
    %v380 = vld [vmem:[%s3 + $0x10] sm:$0xff]
    %v381 = vld [vmem:[%s3 + $0x18] sm:$0xff]
    %v382 = vld [vmem:[%s4] sm:$0xff]
    %v383 = vld [vmem:[%s4 + $0x8] sm:$0xff]
    %v384 = vld [vmem:[%s4 + $0x10] sm:$0xff]
    %v385 = vld [vmem:[%s4 + $0x18] sm:$0xff]
    %387 = vset.pattern.permute.xlu0 0
    %388 = vperm.xlu0 %387, %v382
    %v389 = vpop.permute.xlu0 %388
    %392 = vset.pattern.permute.xlu0 0
    %393 = vperm.xlu0 %392, %v383
    %v394 = vpop.permute.xlu0 %393
    %397 = vset.pattern.permute.xlu0 0
    %398 = vperm.xlu0 %397, %v384
    %v399 = vpop.permute.xlu0 %398
    %402 = vset.pattern.permute.xlu0 0
    %403 = vperm.xlu0 %402, %v385
    %v404 = vpop.permute.xlu0 %403
    %vm406 = vcmask 523264
    %v408 = vsel %vm406, %v378, 0
    %v411 = vsel %vm406, %v379, 0
    %v414 = vsel %vm406, %v380, 0
    %v417 = vsel %vm406, %v381, 0
    %419 = vmatprep.subr.mxu0 %v347
    %420 = vmatpush1.msra.mxu0 %v346
    %421 = vmatprep.subr.mxu0 %v351
    %422 = vmatpush1.msra.mxu0 %v350
    %423 = vmatprep.subr.mxu0 %v355
    %424 = vmatpush1.msra.mxu0 %v354
    %425 = vmatprep.subr.mxu0 %v359
    %426 = vmatpush1.msra.mxu0 %v358
    %427 = vmatprep.subr.mxu0 %v363
    %428 = vmatpush1.msra.mxu0 %v362
    %429 = vmatprep.subr.mxu0 %v367
    %430 = vmatpush1.msra.mxu0 %v366
    %431 = vmatprep.subr.mxu0 %v371
    %432 = vmatpush1.msra.mxu0 %v370
    %433 = vmatprep.subr.mxu0 %v375
    %434 = vmatpush1.msra.mxu0 %v374
    %435 = vmatprep.subr.mxu0 0.0
    %436 = vmatpush1.msra.mxu0 0.0
    %437 = vmatprep.subr.mxu0 0.0
    %438 = vmatpush1.msra.mxu0 0.0
    %439 = vmatprep.subr.mxu0 0.0
    %440 = vmatpush1.msra.mxu0 0.0
    %441 = vmatprep.subr.mxu0 0.0
    %442 = vmatpush1.msra.mxu0 0.0
    %443 = vmatprep.subr.mxu0 0.0
    %444 = vmatpush1.msra.mxu0 0.0
    %445 = vmatprep.subr.mxu0 0.0
    %446 = vmatpush1.msra.mxu0 0.0
    %447 = vmatprep.subr.mxu0 0.0
    %448 = vmatpush1.msra.mxu0 0.0
    %449 = vmatprep.subr.mxu0 0.0
    %450 = vmatpush1.msra.mxu0 0.0
    %451 = vmatprep.subr.mxu0 0.0
    %452 = vmatpush1.msra.mxu0 0.0
    %453 = vmatprep.subr.mxu0 0.0
    %454 = vmatpush1.msra.mxu0 0.0
    %455 = vmatprep.subr.mxu0 0.0
    %456 = vmatpush1.msra.mxu0 0.0
    %457 = vmatprep.subr.mxu0 0.0
    %458 = vmatpush1.msra.mxu0 0.0
    %459 = vmatprep.subr.mxu0 0.0
    %460 = vmatpush1.msra.mxu0 0.0
    %461 = vmatprep.subr.mxu0 0.0
    %462 = vmatpush1.msra.mxu0 0.0
    %463 = vmatprep.subr.mxu0 0.0
    %464 = vmatpush1.msra.mxu0 0.0
    %465 = vmatprep.subr.mxu0 0.0
    %466 = vmatpush1.msra.mxu0 0.0
    %467 = vmatprep.subr.mxu0 0.0
    %468 = vmatpush1.msra.mxu0 0.0
    %469 = vmatprep.subr.mxu0 0.0
    %470 = vmatpush1.msra.mxu0 0.0
    %471 = vmatprep.subr.mxu0 0.0
    %472 = vmatpush1.msra.mxu0 0.0
    %473 = vmatprep.subr.mxu0 0.0
    %474 = vmatpush1.msra.mxu0 0.0
    %475 = vmatprep.subr.mxu0 0.0
    %476 = vmatpush1.msra.mxu0 0.0
    %477 = vmatprep.subr.mxu0 0.0
    %478 = vmatpush1.msra.mxu0 0.0
    %479 = vmatprep.subr.mxu0 0.0
    %480 = vmatpush1.msra.mxu0 0.0
    %481 = vmatprep.subr.mxu0 0.0
    %482 = vmatpush1.msra.mxu0 0.0
    %483 = vmatprep.mubr.f32.mxu0 0.0
    %484 = vmatmul.mubr.f32.gmra.mrb[0].mxu0 %v408
    %v485 = vpop.f32.mrb[0].mxu0
    %v486 = vadd.f32 %v389, %v485
    %v487 = vpop.f32.mrb[0].mxu0
    %v488 = vadd.f32 %v389, %v487
    %489 = vmatprep.mubr.f32.mxu0 0.0
    %490 = vmatmul.mubr.f32.gmra.mrb[0].mxu0 %v411
    %v491 = vpop.f32.mrb[0].mxu0
    %v492 = vadd.f32 %v394, %v491
    %v493 = vpop.f32.mrb[0].mxu0
    %v494 = vadd.f32 %v394, %v493
    %495 = vmatprep.mubr.f32.mxu0 0.0
    %496 = vmatmul.mubr.f32.gmra.mrb[0].mxu0 %v414
    %v497 = vpop.f32.mrb[0].mxu0
    %v498 = vadd.f32 %v399, %v497
    %v499 = vpop.f32.mrb[0].mxu0
    %v500 = vadd.f32 %v399, %v499
    %501 = vmatprep.mubr.f32.mxu0 0.0
    %502 = vmatmul.mubr.f32.gmra.mrb[0].mxu0 %v417
    %v503 = vpop.f32.mrb[0].mxu0
    %v504 = vadd.f32 %v404, %v503
    %v505 = vpop.f32.mrb[0].mxu0
    %v506 = vadd.f32 %v404, %v505
    %507 = vdwg.mxu0
    %508 = vmatprep.subr.mxu0 %v349
    %509 = vmatpush1.msra.mxu0 %v348
    %510 = vmatprep.subr.mxu0 %v353
    %511 = vmatpush1.msra.mxu0 %v352
    %512 = vmatprep.subr.mxu0 %v357
    %513 = vmatpush1.msra.mxu0 %v356
    %514 = vmatprep.subr.mxu0 %v361
    %515 = vmatpush1.msra.mxu0 %v360
    %516 = vmatprep.subr.mxu0 %v365
    %517 = vmatpush1.msra.mxu0 %v364
    %518 = vmatprep.subr.mxu0 %v369
    %519 = vmatpush1.msra.mxu0 %v368
    %520 = vmatprep.subr.mxu0 %v373
    %521 = vmatpush1.msra.mxu0 %v372
    %522 = vmatprep.subr.mxu0 %v377
    %523 = vmatpush1.msra.mxu0 %v376
    %524 = vmatprep.subr.mxu0 0.0
    %525 = vmatpush1.msra.mxu0 0.0
    %526 = vmatprep.subr.mxu0 0.0
    %527 = vmatpush1.msra.mxu0 0.0
    %528 = vmatprep.subr.mxu0 0.0
    %529 = vmatpush1.msra.mxu0 0.0
    %530 = vmatprep.subr.mxu0 0.0
    %531 = vmatpush1.msra.mxu0 0.0
    %532 = vmatprep.subr.mxu0 0.0
    %533 = vmatpush1.msra.mxu0 0.0
    %534 = vmatprep.subr.mxu0 0.0
    %535 = vmatpush1.msra.mxu0 0.0
    %536 = vmatprep.subr.mxu0 0.0
    %537 = vmatpush1.msra.mxu0 0.0
    %538 = vmatprep.subr.mxu0 0.0
    %539 = vmatpush1.msra.mxu0 0.0
    %540 = vmatprep.subr.mxu0 0.0
    %541 = vmatpush1.msra.mxu0 0.0
    %542 = vmatprep.subr.mxu0 0.0
    %543 = vmatpush1.msra.mxu0 0.0
    %544 = vmatprep.subr.mxu0 0.0
    %545 = vmatpush1.msra.mxu0 0.0
    %546 = vmatprep.subr.mxu0 0.0
    %547 = vmatpush1.msra.mxu0 0.0
    %548 = vmatprep.subr.mxu0 0.0
    %549 = vmatpush1.msra.mxu0 0.0
    %550 = vmatprep.subr.mxu0 0.0
    %551 = vmatpush1.msra.mxu0 0.0
    %552 = vmatprep.subr.mxu0 0.0
    %553 = vmatpush1.msra.mxu0 0.0
    %554 = vmatprep.subr.mxu0 0.0
    %555 = vmatpush1.msra.mxu0 0.0
    %556 = vmatprep.subr.mxu0 0.0
    %557 = vmatpush1.msra.mxu0 0.0
    %558 = vmatprep.subr.mxu0 0.0
    %559 = vmatpush1.msra.mxu0 0.0
    %560 = vmatprep.subr.mxu0 0.0
    %561 = vmatpush1.msra.mxu0 0.0
    %562 = vmatprep.subr.mxu0 0.0
    %563 = vmatpush1.msra.mxu0 0.0
    %564 = vmatprep.subr.mxu0 0.0
    %565 = vmatpush1.msra.mxu0 0.0
    %566 = vmatprep.subr.mxu0 0.0
    %567 = vmatpush1.msra.mxu0 0.0
    %568 = vmatprep.subr.mxu0 0.0
    %569 = vmatpush1.msra.mxu0 0.0
    %570 = vmatprep.subr.mxu0 0.0
    %571 = vmatpush1.msra.mxu0 0.0
    %572 = vmatprep.mubr.f32.mxu0 0.0
    %573 = vmatmul.mubr.f32.gmra.mrb[0].mxu0 %v408
    %v574 = vpop.f32.mrb[0].mxu0
    %v575 = vadd.f32 %v389, %v574
    %v576 = vpop.f32.mrb[0].mxu0
    %v577 = vadd.f32 %v389, %v576
    %578 = vmatprep.mubr.f32.mxu0 0.0
    %579 = vmatmul.mubr.f32.gmra.mrb[0].mxu0 %v411
    %v580 = vpop.f32.mrb[0].mxu0
    %v581 = vadd.f32 %v394, %v580
    %v582 = vpop.f32.mrb[0].mxu0
    %v583 = vadd.f32 %v394, %v582
    %584 = vmatprep.mubr.f32.mxu0 0.0
    %585 = vmatmul.mubr.f32.gmra.mrb[0].mxu0 %v414
    %v586 = vpop.f32.mrb[0].mxu0
    %v587 = vadd.f32 %v399, %v586
    %v588 = vpop.f32.mrb[0].mxu0
    %v589 = vadd.f32 %v399, %v588
    %590 = vmatprep.mubr.f32.mxu0 0.0
    %591 = vmatmul.mubr.f32.gmra.mrb[0].mxu0 %v417
    %v592 = vpop.f32.mrb[0].mxu0
    %v593 = vadd.f32 %v404, %v592
    %v594 = vpop.f32.mrb[0].mxu0
    %v595 = vadd.f32 %v404, %v594
    %596 = vdwg.mxu0
    %v597 = vmax.f32 %v486, 0.0
    %v598 = vmax.f32 %v488, 0.0
    %v599 = vmax.f32 %v575, 0.0
    %v600 = vmax.f32 %v577, 0.0
    %v601 = vmax.f32 %v492, 0.0
    %v602 = vmax.f32 %v494, 0.0
    %v603 = vmax.f32 %v581, 0.0
    %v604 = vmax.f32 %v583, 0.0
    %v605 = vmax.f32 %v498, 0.0
    %v606 = vmax.f32 %v500, 0.0
    %v607 = vmax.f32 %v587, 0.0
    %v608 = vmax.f32 %v589, 0.0
    %v609 = vmax.f32 %v504, 0.0
    %v610 = vmax.f32 %v506, 0.0
    %v611 = vmax.f32 %v593, 0.0
    %v612 = vmax.f32 %v595, 0.0
    %v613 = vld [vmem:[%s5] sm:$0xff]
    %v614 = vld [vmem:[%s5 + $0x8] sm:$0xff]
    %v615 = vld [vmem:[%s6] sm:$0xff]
    %v616 = vld [vmem:[%s6 + $0x8] sm:$0xff]
    %618 = vset.pattern.permute.xlu0 0
    %619 = vperm.xlu0 %618, %v615
    %v620 = vpop.permute.xlu0 %619
    %623 = vset.pattern.permute.xlu0 0
    %624 = vperm.xlu0 %623, %v616
    %v625 = vpop.permute.xlu0 %624
    %vm627 = vcmask 261120
    %v629 = vsel %vm627, %v613, 0
    %v632 = vsel %vm627, %v614, 0
    %634 = vmatprep.subr.mxu0 %v598
    %635 = vmatpush1.msra.mxu0 %v597
    %636 = vmatprep.subr.mxu0 %v602
    %637 = vmatpush1.msra.mxu0 %v601
    %638 = vmatprep.subr.mxu0 %v606
    %639 = vmatpush1.msra.mxu0 %v605
    %640 = vmatprep.subr.mxu0 %v610
    %641 = vmatpush1.msra.mxu0 %v609
    %642 = vmatprep.subr.mxu0 0.0
    %643 = vmatpush1.msra.mxu0 0.0
    %644 = vmatprep.subr.mxu0 0.0
    %645 = vmatpush1.msra.mxu0 0.0
    %646 = vmatprep.subr.mxu0 0.0
    %647 = vmatpush1.msra.mxu0 0.0
    %648 = vmatprep.subr.mxu0 0.0
    %649 = vmatpush1.msra.mxu0 0.0
    %650 = vmatprep.subr.mxu0 0.0
    %651 = vmatpush1.msra.mxu0 0.0
    %652 = vmatprep.subr.mxu0 0.0
    %653 = vmatpush1.msra.mxu0 0.0
    %654 = vmatprep.subr.mxu0 0.0
    %655 = vmatpush1.msra.mxu0 0.0
    %656 = vmatprep.subr.mxu0 0.0
    %657 = vmatpush1.msra.mxu0 0.0
    %658 = vmatprep.subr.mxu0 0.0
    %659 = vmatpush1.msra.mxu0 0.0
    %660 = vmatprep.subr.mxu0 0.0
    %661 = vmatpush1.msra.mxu0 0.0
    %662 = vmatprep.subr.mxu0 0.0
    %663 = vmatpush1.msra.mxu0 0.0
    %664 = vmatprep.subr.mxu0 0.0
    %665 = vmatpush1.msra.mxu0 0.0
    %666 = vmatprep.subr.mxu0 0.0
    %667 = vmatpush1.msra.mxu0 0.0
    %668 = vmatprep.subr.mxu0 0.0
    %669 = vmatpush1.msra.mxu0 0.0
    %670 = vmatprep.subr.mxu0 0.0
    %671 = vmatpush1.msra.mxu0 0.0
    %672 = vmatprep.subr.mxu0 0.0
    %673 = vmatpush1.msra.mxu0 0.0
    %674 = vmatprep.subr.mxu0 0.0
    %675 = vmatpush1.msra.mxu0 0.0
    %676 = vmatprep.subr.mxu0 0.0
    %677 = vmatpush1.msra.mxu0 0.0
    %678 = vmatprep.subr.mxu0 0.0
    %679 = vmatpush1.msra.mxu0 0.0
    %680 = vmatprep.subr.mxu0 0.0
    %681 = vmatpush1.msra.mxu0 0.0
    %682 = vmatprep.subr.mxu0 0.0
    %683 = vmatpush1.msra.mxu0 0.0
    %684 = vmatprep.subr.mxu0 0.0
    %685 = vmatpush1.msra.mxu0 0.0
    %686 = vmatprep.subr.mxu0 0.0
    %687 = vmatpush1.msra.mxu0 0.0
    %688 = vmatprep.subr.mxu0 0.0
    %689 = vmatpush1.msra.mxu0 0.0
    %690 = vmatprep.subr.mxu0 0.0
    %691 = vmatpush1.msra.mxu0 0.0
    %692 = vmatprep.subr.mxu0 0.0
    %693 = vmatpush1.msra.mxu0 0.0
    %694 = vmatprep.subr.mxu0 0.0
    %695 = vmatpush1.msra.mxu0 0.0
    %696 = vmatprep.subr.mxu0 0.0
    %697 = vmatpush1.msra.mxu0 0.0
    %698 = vmatprep.mubr.f32.mxu0 0.0
    %699 = vmatmul.mubr.f32.gmra.mrb[0].mxu0 %v629
    %v700 = vpop.f32.mrb[0].mxu0
    %v701 = vadd.f32 %v620, %v700
    %v702 = vpop.f32.mrb[0].mxu0
    %v703 = vadd.f32 %v620, %v702
    %704 = vmatprep.mubr.f32.mxu0 0.0
    %705 = vmatmul.mubr.f32.gmra.mrb[0].mxu0 %v632
    %v706 = vpop.f32.mrb[0].mxu0
    %v707 = vadd.f32 %v625, %v706
    %v708 = vpop.f32.mrb[0].mxu0
    %v709 = vadd.f32 %v625, %v708
    %710 = vdwg.mxu0
    %711 = vmatprep.subr.mxu0 %v600
    %712 = vmatpush1.msra.mxu0 %v599
    %713 = vmatprep.subr.mxu0 %v604
    %714 = vmatpush1.msra.mxu0 %v603
    %715 = vmatprep.subr.mxu0 %v608
    %716 = vmatpush1.msra.mxu0 %v607
    %717 = vmatprep.subr.mxu0 %v612
    %718 = vmatpush1.msra.mxu0 %v611
    %719 = vmatprep.subr.mxu0 0.0
    %720 = vmatpush1.msra.mxu0 0.0
    %721 = vmatprep.subr.mxu0 0.0
    %722 = vmatpush1.msra.mxu0 0.0
    %723 = vmatprep.subr.mxu0 0.0
    %724 = vmatpush1.msra.mxu0 0.0
    %725 = vmatprep.subr.mxu0 0.0
    %726 = vmatpush1.msra.mxu0 0.0
    %727 = vmatprep.subr.mxu0 0.0
    %728 = vmatpush1.msra.mxu0 0.0
    %729 = vmatprep.subr.mxu0 0.0
    %730 = vmatpush1.msra.mxu0 0.0
    %731 = vmatprep.subr.mxu0 0.0
    %732 = vmatpush1.msra.mxu0 0.0
    %733 = vmatprep.subr.mxu0 0.0
    %734 = vmatpush1.msra.mxu0 0.0
    %735 = vmatprep.subr.mxu0 0.0
    %736 = vmatpush1.msra.mxu0 0.0
    %737 = vmatprep.subr.mxu0 0.0
    %738 = vmatpush1.msra.mxu0 0.0
    %739 = vmatprep.subr.mxu0 0.0
    %740 = vmatpush1.msra.mxu0 0.0
    %741 = vmatprep.subr.mxu0 0.0
    %742 = vmatpush1.msra.mxu0 0.0
    %743 = vmatprep.subr.mxu0 0.0
    %744 = vmatpush1.msra.mxu0 0.0
    %745 = vmatprep.subr.mxu0 0.0
    %746 = vmatpush1.msra.mxu0 0.0
    %747 = vmatprep.subr.mxu0 0.0
    %748 = vmatpush1.msra.mxu0 0.0
    %749 = vmatprep.subr.mxu0 0.0
    %750 = vmatpush1.msra.mxu0 0.0
    %751 = vmatprep.subr.mxu0 0.0
    %752 = vmatpush1.msra.mxu0 0.0
    %753 = vmatprep.subr.mxu0 0.0
    %754 = vmatpush1.msra.mxu0 0.0
    %755 = vmatprep.subr.mxu0 0.0
    %756 = vmatpush1.msra.mxu0 0.0
    %757 = vmatprep.subr.mxu0 0.0
    %758 = vmatpush1.msra.mxu0 0.0
    %759 = vmatprep.subr.mxu0 0.0
    %760 = vmatpush1.msra.mxu0 0.0
    %761 = vmatprep.subr.mxu0 0.0
    %762 = vmatpush1.msra.mxu0 0.0
    %763 = vmatprep.subr.mxu0 0.0
    %764 = vmatpush1.msra.mxu0 0.0
    %765 = vmatprep.subr.mxu0 0.0
    %766 = vmatpush1.msra.mxu0 0.0
    %767 = vmatprep.subr.mxu0 0.0
    %768 = vmatpush1.msra.mxu0 0.0
    %769 = vmatprep.subr.mxu0 0.0
    %770 = vmatpush1.msra.mxu0 0.0
    %771 = vmatprep.subr.mxu0 0.0
    %772 = vmatpush1.msra.mxu0 0.0
    %773 = vmatprep.subr.mxu0 0.0
    %774 = vmatpush1.msra.mxu0 0.0
    %775 = vmatprep.mubr.f32.mxu0 0.0
    %776 = vmatmul.mubr.f32.gmra.mrb[0].mxu0 %v629
    %v777 = vpop.f32.mrb[0].mxu0
    %v778 = vadd.f32 %v620, %v777
    %v779 = vpop.f32.mrb[0].mxu0
    %v780 = vadd.f32 %v620, %v779
    %781 = vmatprep.mubr.f32.mxu0 0.0
    %782 = vmatmul.mubr.f32.gmra.mrb[0].mxu0 %v632
    %v783 = vpop.f32.mrb[0].mxu0
    %v784 = vadd.f32 %v625, %v783
    %v785 = vpop.f32.mrb[0].mxu0
    %v786 = vadd.f32 %v625, %v785
    %787 = vdwg.mxu0
    %v788 = vmax.f32 %v701, 0.0
    %v789 = vmax.f32 %v703, 0.0
    %v790 = vmax.f32 %v778, 0.0
    %v791 = vmax.f32 %v780, 0.0
    %v792 = vmax.f32 %v707, 0.0
    %v793 = vmax.f32 %v709, 0.0
    %v794 = vmax.f32 %v784, 0.0
    %v795 = vmax.f32 %v786, 0.0
    %v796 = vld [vmem:[%s7] sm:$0x1]
    %v797 = vld [vmem:[#allocation2] sm:$0x1]
    %799 = vset.pattern.permute.xlu0 0
    %800 = vperm.xlu0 %799, %v797
    %v801 = vpop.permute.xlu0 %800
    %v803 = vlaneseq
    %v804 = vshrl.u32 %v803, 7
    %v805 = vsub.s32 0, %v804
    %v806 = vrot.slane %v801, %v805
    %vm807 = vcmask 130048
    %v809 = vsel %vm807, %v796, 0
    %811 = vmatprep.subr.mxu0 %v789
    %812 = vmatpush1.msra.mxu0 %v788
    %813 = vmatprep.subr.mxu0 %v793
    %814 = vmatpush1.msra.mxu0 %v792
    %815 = vmatprep.subr.mxu0 0.0
    %816 = vmatpush1.msra.mxu0 0.0
    %817 = vmatprep.subr.mxu0 0.0
    %818 = vmatpush1.msra.mxu0 0.0
    %819 = vmatprep.subr.mxu0 0.0
    %820 = vmatpush1.msra.mxu0 0.0
    %821 = vmatprep.subr.mxu0 0.0
    %822 = vmatpush1.msra.mxu0 0.0
    %823 = vmatprep.subr.mxu0 0.0
    %824 = vmatpush1.msra.mxu0 0.0
    %825 = vmatprep.subr.mxu0 0.0
    %826 = vmatpush1.msra.mxu0 0.0
    %827 = vmatprep.subr.mxu0 0.0
    %828 = vmatpush1.msra.mxu0 0.0
    %829 = vmatprep.subr.mxu0 0.0
    %830 = vmatpush1.msra.mxu0 0.0
    %831 = vmatprep.subr.mxu0 0.0
    %832 = vmatpush1.msra.mxu0 0.0
    %833 = vmatprep.subr.mxu0 0.0
    %834 = vmatpush1.msra.mxu0 0.0
    %835 = vmatprep.subr.mxu0 0.0
    %836 = vmatpush1.msra.mxu0 0.0
    %837 = vmatprep.subr.mxu0 0.0
    %838 = vmatpush1.msra.mxu0 0.0
    %839 = vmatprep.subr.mxu0 0.0
    %840 = vmatpush1.msra.mxu0 0.0
    %841 = vmatprep.subr.mxu0 0.0
    %842 = vmatpush1.msra.mxu0 0.0
    %843 = vmatprep.subr.mxu0 0.0
    %844 = vmatpush1.msra.mxu0 0.0
    %845 = vmatprep.subr.mxu0 0.0
    %846 = vmatpush1.msra.mxu0 0.0
    %847 = vmatprep.subr.mxu0 0.0
    %848 = vmatpush1.msra.mxu0 0.0
    %849 = vmatprep.subr.mxu0 0.0
    %850 = vmatpush1.msra.mxu0 0.0
    %851 = vmatprep.subr.mxu0 0.0
    %852 = vmatpush1.msra.mxu0 0.0
    %853 = vmatprep.subr.mxu0 0.0
    %854 = vmatpush1.msra.mxu0 0.0
    %855 = vmatprep.subr.mxu0 0.0
    %856 = vmatpush1.msra.mxu0 0.0
    %857 = vmatprep.subr.mxu0 0.0
    %858 = vmatpush1.msra.mxu0 0.0
    %859 = vmatprep.subr.mxu0 0.0
    %860 = vmatpush1.msra.mxu0 0.0
    %861 = vmatprep.subr.mxu0 0.0
    %862 = vmatpush1.msra.mxu0 0.0
    %863 = vmatprep.subr.mxu0 0.0
    %864 = vmatpush1.msra.mxu0 0.0
    %865 = vmatprep.subr.mxu0 0.0
    %866 = vmatpush1.msra.mxu0 0.0
    %867 = vmatprep.subr.mxu0 0.0
    %868 = vmatpush1.msra.mxu0 0.0
    %869 = vmatprep.subr.mxu0 0.0
    %870 = vmatpush1.msra.mxu0 0.0
    %871 = vmatprep.subr.mxu0 0.0
    %872 = vmatpush1.msra.mxu0 0.0
    %873 = vmatprep.subr.mxu0 0.0
    %874 = vmatpush1.msra.mxu0 0.0
    %875 = vmatprep.mubr.f32.mxu0 0.0
    %876 = vmatmul.mubr.f32.gmra.mrb[0].mxu0 %v809
    %v877 = vpop.f32.mrb[0].mxu0
    %v878 = vadd.f32 %v806, %v877
    %v879 = vpop.f32.mrb[0].mxu0
    %v880 = vadd.f32 %v806, %v879
    %881 = vdwg.mxu0
    %882 = vmatprep.subr.mxu0 %v791
    %883 = vmatpush1.msra.mxu0 %v790
    %884 = vmatprep.subr.mxu0 %v795
    %885 = vmatpush1.msra.mxu0 %v794
    %886 = vmatprep.subr.mxu0 0.0
    %887 = vmatpush1.msra.mxu0 0.0
    %888 = vmatprep.subr.mxu0 0.0
    %889 = vmatpush1.msra.mxu0 0.0
    %890 = vmatprep.subr.mxu0 0.0
    %891 = vmatpush1.msra.mxu0 0.0
    %892 = vmatprep.subr.mxu0 0.0
    %893 = vmatpush1.msra.mxu0 0.0
    %894 = vmatprep.subr.mxu0 0.0
    %895 = vmatpush1.msra.mxu0 0.0
    %896 = vmatprep.subr.mxu0 0.0
    %897 = vmatpush1.msra.mxu0 0.0
    %898 = vmatprep.subr.mxu0 0.0
    %899 = vmatpush1.msra.mxu0 0.0
    %900 = vmatprep.subr.mxu0 0.0
    %901 = vmatpush1.msra.mxu0 0.0
    %902 = vmatprep.subr.mxu0 0.0
    %903 = vmatpush1.msra.mxu0 0.0
    %904 = vmatprep.subr.mxu0 0.0
    %905 = vmatpush1.msra.mxu0 0.0
    %906 = vmatprep.subr.mxu0 0.0
    %907 = vmatpush1.msra.mxu0 0.0
    %908 = vmatprep.subr.mxu0 0.0
    %909 = vmatpush1.msra.mxu0 0.0
    %910 = vmatprep.subr.mxu0 0.0
    %911 = vmatpush1.msra.mxu0 0.0
    %912 = vmatprep.subr.mxu0 0.0
    %913 = vmatpush1.msra.mxu0 0.0
    %914 = vmatprep.subr.mxu0 0.0
    %915 = vmatpush1.msra.mxu0 0.0
    %916 = vmatprep.subr.mxu0 0.0
    %917 = vmatpush1.msra.mxu0 0.0
    %918 = vmatprep.subr.mxu0 0.0
    %919 = vmatpush1.msra.mxu0 0.0
    %920 = vmatprep.subr.mxu0 0.0
    %921 = vmatpush1.msra.mxu0 0.0
    %922 = vmatprep.subr.mxu0 0.0
    %923 = vmatpush1.msra.mxu0 0.0
    %924 = vmatprep.subr.mxu0 0.0
    %925 = vmatpush1.msra.mxu0 0.0
    %926 = vmatprep.subr.mxu0 0.0
    %927 = vmatpush1.msra.mxu0 0.0
    %928 = vmatprep.subr.mxu0 0.0
    %929 = vmatpush1.msra.mxu0 0.0
    %930 = vmatprep.subr.mxu0 0.0
    %931 = vmatpush1.msra.mxu0 0.0
    %932 = vmatprep.subr.mxu0 0.0
    %933 = vmatpush1.msra.mxu0 0.0
    %934 = vmatprep.subr.mxu0 0.0
    %935 = vmatpush1.msra.mxu0 0.0
    %936 = vmatprep.subr.mxu0 0.0
    %937 = vmatpush1.msra.mxu0 0.0
    %938 = vmatprep.subr.mxu0 0.0
    %939 = vmatpush1.msra.mxu0 0.0
    %940 = vmatprep.subr.mxu0 0.0
    %941 = vmatpush1.msra.mxu0 0.0
    %942 = vmatprep.subr.mxu0 0.0
    %943 = vmatpush1.msra.mxu0 0.0
    %944 = vmatprep.subr.mxu0 0.0
    %945 = vmatpush1.msra.mxu0 0.0
    %946 = vmatprep.mubr.f32.mxu0 0.0
    %947 = vmatmul.mubr.f32.gmra.mrb[0].mxu0 %v809
    %v948 = vpop.f32.mrb[0].mxu0
    %v949 = vadd.f32 %v806, %v948
    %v950 = vpop.f32.mrb[0].mxu0
    %v951 = vadd.f32 %v806, %v950
    %952 = vdwg.mxu0
    %v957 = vcombine.low %v878, %v880
    %v958 = vcombine.low %v949, %v951
    %v960 = vunpack.c.l.s4 1966171168
    %v961 = vunpack.c.0.s8 %v960
    %v962 = vlaneseq
    %v963 = vshrl.u32 %v962, 7
    %v964 = vsub.s32 %v961, %v963
    %v965 = vrot.slane %v957, %v964
    %v967 = vunpack.c.l.s4 1966171168
    %v968 = vunpack.c.0.s8 %v967
    %v969 = vlaneseq
    %v970 = vshrl.u32 %v969, 7
    %v971 = vsub.s32 %v968, %v970
    %v972 = vrot.slane %v958, %v971
    %v973 = vcombine.low %v965, %v972
    %v975 = vunpack.c.l.s4 1966171168
    %v976 = vunpack.c.0.s8 %v975
    %v977 = vlaneseq
    %v978 = vshrl.u32 %v977, 7
    %v979 = vsub.s32 %v976, %v978
    %v980 = vrot.slane %v973, %v979
    %v982 = vlaneseq
    %vm983 = vcmp.ge.s32.totalorder %v982, 0
    %vm984 = vcmp.lt.s32.totalorder %v982, 512
    %vm985 = vmand %vm983, %vm984
    %986 = vst.msk [vmem:[#allocation3] sm:$0xf] %vm985, %v980
    // Predicated region
    $region38: #{tpu_custom_call.1} parent=1 // pred_check
      _
    $region39: #{tpu_custom_call.1} parent=1 // pred_check_branch
      %988 = sbr.rel (0) target = $region41
    $region40: #{tpu_custom_call.1} parent=1 // pred_region
      %s990 = ssub.s32 64, 64
      %991 = vsyncadd [#allocation4], %s990
      %s993 = sshll.u32 [#allocation3], 4
      %s994 = int_to_ptr.vmem [resolvable:$true] %s993
      %996 = dma.vmem_to_hbm [thread:$0]  %s994, 64, %s9, [#allocation4]
    $region41: #{tpu_custom_call.1} parent=1 // pred_fallthru
      _
    // Predicated region
    $region42: #{tpu_custom_call.1} parent=1 // pred_check
      _
    $region43: #{tpu_custom_call.1} parent=1 // pred_check_branch
      %998 = sbr.rel (0) target = $region45
    $region44: #{tpu_custom_call.1} parent=1 // pred_region
      %999 = dma.done [#allocation4], 64
    $region45: #{tpu_custom_call.1} parent=1 // pred_fallthru
      _
    %1000 = vsyncpa [#allocation4], 1

</llo_original>
